<compile_context>
chip_gen: v7x
topology: tpu7x:2x2x1
jax: 0.10.0
libtpu: 0.0.40
codegen_flags: <defaults>
</compile_context>

<pallas_src>
import functools

import jax
import jax.numpy as jnp
import numpy as np
from jax.experimental import pallas as pl
from jax.experimental.pallas import tpu as pltpu

LANES = 128


def _round_up(x, m):
    return ((x + m - 1) // m) * m


# ---------------------------------------------------------------------------
# Parameter construction (deterministic, mirrors CSQLoss.__init__ for bit=32)
# ---------------------------------------------------------------------------
def hadamard(n):
    """Sylvester Hadamard matrix, n must be a power of 2."""
    H = np.array([[1.0]], dtype=np.float32)
    while H.shape[0] < n:
        H = np.block([[H, H], [H, -H]])
    return H


def get_hash_targets(n_class, bit):
    H_K = hadamard(bit)
    H_2K = np.concatenate((H_K, -H_K), axis=0)
    assert H_2K.shape[0] >= n_class, "need n_class <= 2*bit for hadamard centers"
    return jnp.asarray(H_2K[:n_class], dtype=jnp.float32)


# ---------------------------------------------------------------------------
# Pallas kernel: lane-dense elementwise stream with a resident tile accumulator.
# ---------------------------------------------------------------------------
def _csq_loss_kernel(u_ref, hc_ref, out_ref, *, lambd):
    # out_ref is the (tile_rows, 128) f32 partial-sum accumulator for this partial
    # (grid axis 0); it is revisited across the reduction grid axis 1.
    @pl.when(pl.program_id(1) == 0)
    def _():
        out_ref[...] = jnp.zeros_like(out_ref)

    # In-kernel upcast: inputs may be bf16/f32; keep elementwise math in f32
    # (v5e has no bf16 VPU/EUP).
    u = u_ref[...].astype(jnp.float32)
    hc = hc_ref[...].astype(jnp.float32)

    # hc is exactly +-1, so BCE(0.5*(u+1), 0.5*(hc+1)) = -max(log(0.5*(1+hc*u)), -100)
    # (single EUP log per element; -100 is the torch.nn.BCELoss log clamp).
    bce = -jnp.maximum(jnp.log(0.5 * (1.0 + hc * u)), -100.0)
    q = jnp.abs(u) - 1.0
    out_ref[...] += bce + lambd * (q * q)     # pure VPU accumulate, no XLU per tile


def csq_loss(u, y, hash_targets, lambd, *, block_rows=1024, num_partials=2):
    n, bit = u.shape
    assert y.shape[0] == n

    # Hoisted out of the kernel (tiny XLA ops): first-max argmax + center row gather.
    labels = jnp.argmax(y, axis=1)
    hc = hash_targets[labels].astype(u.dtype)          # (n, bit), exactly +-1

    total = n * bit
    block_rows = _round_up(max(int(block_rows), 8), 8)
    num_partials = max(int(num_partials), 1)

    rows = _round_up(-(-total // LANES), 8)            # ceil(total/128), multiple of 8
    tile_rows = min(block_rows, rows)
    rows = _round_up(rows, tile_rows * num_partials)
    padded_total = rows * LANES

    # Pad with (u=1, hc=1): log(0.5*(1+1)) = 0 and (|1|-1)^2 = 0, so padding adds 0.
    pad = padded_total - total
    u_flat = jnp.pad(u.reshape(-1), (0, pad), constant_values=1.0).reshape(rows, LANES)
    hc_flat = jnp.pad(hc.reshape(-1), (0, pad), constant_values=1.0).reshape(rows, LANES)

    tiles_per_partial = rows // (tile_rows * num_partials)

    def in_map(i, j):
        return (i * tiles_per_partial + j, 0)

    kernel = functools.partial(_csq_loss_kernel, lambd=float(lambd))

    partial_sums = pl.pallas_call(
        kernel,
        out_shape=jax.ShapeDtypeStruct((num_partials * tile_rows, LANES), jnp.float32),
        grid_spec=pltpu.PrefetchScalarGridSpec(
            num_scalar_prefetch=0,
            grid=(num_partials, tiles_per_partial),
            in_specs=[
                pl.BlockSpec((tile_rows, LANES), in_map),   # u slab tile
                pl.BlockSpec((tile_rows, LANES), in_map),   # hash_center slab tile
            ],
            out_specs=pl.BlockSpec((tile_rows, LANES), lambda i, j: (i, 0)),
        ),
        compiler_params=pltpu.CompilerParams(
            # Per-partial axis is independent (v7x can split across its 2 TCs);
            # the reduction axis carries the resident accumulator block.
            dimension_semantics=("parallel", "arbitrary"),
        ),
    )(u_flat, hc_flat)

    # Final mean: one tiny XLA reduction over num_partials*tile_rows*128 f32 partials.
    return jnp.sum(partial_sums) / float(total)


# ---------------------------------------------------------------------------
# Pure-JAX reference (matches the torch forward exactly)
# ---------------------------------------------------------------------------
def csq_loss_ref(u, y, hash_targets, lambd):
    hash_center = hash_targets[jnp.argmax(y, axis=1)]
    p = 0.5 * (u + 1.0)
    t = 0.5 * (hash_center + 1.0)
    bce = -(t * jnp.maximum(jnp.log(p), -100.0)
            + (1.0 - t) * jnp.maximum(jnp.log(1.0 - p), -100.0))
    center_loss = jnp.mean(bce)
    q_loss = jnp.mean((jnp.abs(u) - 1.0) ** 2)
    return center_loss + lambd * q_loss


if __name__ == "__main__":
    key = jax.random.PRNGKey(0)
    k_u, k_lab, k_u2, k_lab2 = jax.random.split(key, 4)

    num_classes = 16
    bit = 32
    lambd = 0.0001

    hash_targets = get_hash_targets(num_classes, bit)

    # Case 1: small batch, default tiling (single tile per partial).
    batch = 16
    u = jnp.tanh(jax.random.normal(k_u, (batch, bit), dtype=jnp.float32))
    labels = jax.random.randint(k_lab, (batch,), 0, num_classes)
    y = jax.nn.one_hot(labels, num_classes, dtype=jnp.float32)

    loss = csq_loss(u, y, hash_targets, lambd)
    jax.block_until_ready(loss)
    ref = csq_loss_ref(u, y, hash_targets, lambd)
    np.testing.assert_allclose(np.asarray(loss), np.asarray(ref), rtol=1e-5, atol=1e-5)

    # Case 2: exercises multi-tile accumulation across the reduction grid axis.
    batch2 = 128
    u2 = jnp.tanh(jax.random.normal(k_u2, (batch2, bit), dtype=jnp.float32))
    labels2 = jax.random.randint(k_lab2, (batch2,), 0, num_classes)
    y2 = jax.nn.one_hot(labels2, num_classes, dtype=jnp.float32)

    loss2 = csq_loss(u2, y2, hash_targets, lambd, block_rows=8)
    jax.block_until_ready(loss2)
    ref2 = csq_loss_ref(u2, y2, hash_targets, lambd)
    np.testing.assert_allclose(np.asarray(loss2), np.asarray(ref2), rtol=1e-5, atol=1e-5)

    print("KERNEL_OK")
</pallas_src>

<mosaic_0001>
module attributes {stable_mosaic.version = 11 : i64} {
  func.func @_csq_loss_kernel(%arg0: i32, %arg1: i32, %arg2: memref<8x128xf32, #tpu.memory_space<vmem>>, %arg3: memref<8x128xf32, #tpu.memory_space<vmem>>, %arg4: memref<8x128xf32, #tpu.memory_space<vmem>>) attributes {dimension_semantics = [#tpu.dimension_semantics<parallel>, #tpu.dimension_semantics<arbitrary>], iteration_bounds = array<i64: 2, 1>, scalar_prefetch = 0 : i64, scratch_operands = 0 : i64, tpu.core_type = #tpu.core_type<tc>, window_params = [{transform_indices = @transform_0, window_bounds = array<i64: 8, 128>}, {transform_indices = @transform_1, window_bounds = array<i64: 8, 128>}, {transform_indices = @transform_2, window_bounds = array<i64: 8, 128>}]} {
    %c0_i32 = arith.constant 0 : i32
    %0 = arith.cmpi eq, %arg1, %c0_i32 : i32
    %1 = arith.extui %0 : i1 to i32
    %c0_i32_0 = arith.constant 0 : i32
    %2 = arith.cmpi ne, %1, %c0_i32_0 : i32
    scf.if %2 {
      %cst_13 = arith.constant 0.000000e+00 : f32
      %25 = vector.broadcast %cst_13 : f32 to vector<8x128xf32>
      %c0_14 = arith.constant 0 : index
      %c0_15 = arith.constant 0 : index
      %26 = vector.load %arg4[%c0_14, %c0_15] : memref<8x128xf32, #tpu.memory_space<vmem>>, vector<8x128xf32>
      tpu.vector_store %arg4[%c0_14, %c0_15], %25 {strides = array<i32>} : memref<8x128xf32, #tpu.memory_space<vmem>>, vector<8x128xf32>,
    } else {
    }
    %c0 = arith.constant 0 : index
    %c0_1 = arith.constant 0 : index
    %3 = vector.load %arg2[%c0, %c0_1] : memref<8x128xf32, #tpu.memory_space<vmem>>, vector<8x128xf32>
    %c0_2 = arith.constant 0 : index
    %c0_3 = arith.constant 0 : index
    %4 = vector.load %arg3[%c0_2, %c0_3] : memref<8x128xf32, #tpu.memory_space<vmem>>, vector<8x128xf32>
    %5 = arith.mulf %4, %3 : vector<8x128xf32>
    %cst = arith.constant 1.000000e+00 : f32
    %6 = vector.broadcast %cst : f32 to vector<8x128xf32>
    %7 = arith.addf %6, %5 : vector<8x128xf32>
    %cst_4 = arith.constant 5.000000e-01 : f32
    %8 = vector.broadcast %cst_4 : f32 to vector<8x128xf32>
    %9 = arith.mulf %8, %7 : vector<8x128xf32>
    %10 = math.log %9 : vector<8x128xf32>
    %cst_5 = arith.constant -1.000000e+02 : f32
    %11 = vector.broadcast %cst_5 : f32 to vector<8x128xf32>
    %12 = arith.maximumf %10, %11 : vector<8x128xf32>
    %cst_6 = arith.constant 0.000000e+00 : f32
    %13 = vector.broadcast %cst_6 : f32 to vector<8x128xf32>
    %14 = arith.subf %13, %12 : vector<8x128xf32>
    %15 = math.absf %3 : vector<8x128xf32>
    %cst_7 = arith.constant 1.000000e+00 : f32
    %16 = vector.broadcast %cst_7 : f32 to vector<8x128xf32>
    %17 = arith.subf %15, %16 : vector<8x128xf32>
    %c0_8 = arith.constant 0 : index
    %c0_9 = arith.constant 0 : index
    %18 = vector.load %arg4[%c0_8, %c0_9] : memref<8x128xf32, #tpu.memory_space<vmem>>, vector<8x128xf32>
    %19 = arith.mulf %17, %17 : vector<8x128xf32>
    %cst_10 = arith.constant 9.99999974E-5 : f32
    %20 = vector.broadcast %cst_10 : f32 to vector<8x128xf32>
    %21 = arith.mulf %20, %19 : vector<8x128xf32>
    %22 = arith.addf %14, %21 : vector<8x128xf32>
    %23 = arith.addf %18, %22 : vector<8x128xf32>
    %c0_11 = arith.constant 0 : index
    %c0_12 = arith.constant 0 : index
    %24 = vector.load %arg4[%c0_11, %c0_12] : memref<8x128xf32, #tpu.memory_space<vmem>>, vector<8x128xf32>
    tpu.vector_store %arg4[%c0_11, %c0_12], %23 {strides = array<i32>} : memref<8x128xf32, #tpu.memory_space<vmem>>, vector<8x128xf32>,
    return
  }
  func.func @transform_0(%arg0: i32, %arg1: i32) -> (i32, i32) {
    %c1_i32 = arith.constant 1 : i32
    %0 = arith.muli %arg0, %c1_i32 : i32
    %1 = arith.addi %0, %arg1 : i32
    %c0_i32 = arith.constant 0 : i32
    %c0_i32_0 = arith.constant 0 : i32
    return %1, %c0_i32 : i32, i32
  }
  func.func @transform_1(%arg0: i32, %arg1: i32) -> (i32, i32) {
    %c1_i32 = arith.constant 1 : i32
    %0 = arith.muli %arg0, %c1_i32 : i32
    %1 = arith.addi %0, %arg1 : i32
    %c0_i32 = arith.constant 0 : i32
    %c0_i32_0 = arith.constant 0 : i32
    return %1, %c0_i32 : i32, i32
  }
  func.func @transform_2(%arg0: i32, %arg1: i32) -> (i32, i32) {
    %c0_i32 = arith.constant 0 : i32
    %c0_i32_0 = arith.constant 0 : i32
    return %arg0, %c0_i32 : i32, i32
  }
}

</mosaic_0001>

<llo_original>
// kernel: tpu_custom_call.1
$region0: #{tpu_custom_call.1}
  #allocation0 [shape = 'u32[]', space=smem, size = 0x4, offset = 0x4, fixed_abs, tag = 'smem constant byte address 0x4 - core index']
  #allocation1 [shape = 'u32[144,128]{1,0:T(1,128)}', space=vmem, size = 0x12000, scoped, tag = 'internal scratch']
  %s0 = inlined_call_operand.hbm [shape: f32[16,128], index: 0, kind: input, shape index: {}]
  %s1 = inlined_call_operand.hbm [shape: f32[16,128], index: 1, kind: input, shape index: {}]
  %s2 = inlined_call_operand.hbm [shape: f32[16,128], index: 2, kind: output, shape index: {}]
  %s3 = sld [smem:[#allocation0]]
  $region53: #{tpu_custom_call.1} parent=0
    _
  %s5 = ssub.s32 1, %s3
  %s6 = scalar_select 0, %s5, %s3
  $region1: #{tpu_custom_call.1} parent=0
    #allocation2 [shape = 'u8[8192]{0}', space=vmem, size = 0x2000, scoped, tag = 'input window, operand 0']
    #allocation3 [shape = 's32[2]{0}', space=sflag, size = 0x8, scoped, tag = 'scoped memory for tpu_custom_call.1']
    #allocation4 [shape = 's32[2]{0}', space=sflag, size = 0x8, scoped, tag = 'scoped memory for tpu_custom_call.1']
    #allocation5 [shape = 'u8[8192]{0}', space=vmem, size = 0x2000, scoped, tag = 'input window, operand 1']
    #allocation6 [shape = 's32[2]{0}', space=sflag, size = 0x8, scoped, tag = 'scoped memory for tpu_custom_call.1']
    #allocation7 [shape = 'u8[8192]{0}', space=vmem, size = 0x2000, scoped, tag = 'output window, operand 0']
    %7 = vsyncpa [#allocation3], 0
    %s8 = scalar_lea.sflag [#allocation3], 1
    %9 = vsyncpa %s8, 0
    %10 = vsyncpa [#allocation6], 0
    %s11 = scalar_lea.sflag [#allocation6], 1
    %12 = vsyncpa %s11, 0
    %13 = vsyncpa [#allocation4], 0
    %s14 = scalar_lea.sflag [#allocation4], 1
    %15 = vsyncpa %s14, 0
    loop: start=0, step=1, limit=4
    $region2: #{tpu_custom_call.1} parent=1 // loop_pre_header
      _
    $region3: #{tpu_custom_call.1} parent=1 // loop_header
      %s17 = sphi 0, %s21
      %p18 = scmp.ge.s32.totalorder %s17, 4
      %s24 = sphi 0, %s36
      %s25 = sphi 0, %s32
      %s26 = sphi 0, %s24
      %s27 = sphi 0, %s25
      %s28 = sphi 0, %s26
      %s29 = sphi 0, %s27
      %s41 = sphi 0, %s43
      %s44 = sphi 0, %s41
      %s45 = sphi 0, %s44
      %s61 = sphi 0, %s45
      %s69 = sphi 0, %s71
      %s72 = sphi 0, %s69
      %s73 = sphi 0, %s72
      %s89 = sphi 0, %s73
      %s95 = sphi 0, %s97
      %s98 = sphi 0, %s95
      %s99 = sphi 0, %s98
      %s115 = sphi 0, %s99
    $region4: #{tpu_custom_call.1} parent=1 // loop_header_branch
      %20 = sbr.rel (%p18) target = $region8
    $region5: #{tpu_custom_call.1} parent=1 // loop_body
      %s22 = ssub.s32 %s17, 1
      %s23 = ssub.s32 %s17, 2
      %s30 = sadd.s32 1, %s25
      %p31 = scmp.ge.s32.totalorder %s30, 1
      %s32 = scalar_select %p31, 0, %s30
      %s33 = sadd.s32 1, %s24
      %s34 = scalar_select %p31, %s33, %s24
      %p35 = scmp.ge.s32.totalorder %s34, 2
      %s36 = scalar_select %p35, 0, %s34
      %s37 = sadd.s32 %s24, %s25
      %s38 = sadd.s32 %s36, %s32
      %s39 = ssub.s32 %s37, %s38
      %p40 = scmp.eq.s32.totalorder %s39, 0
      %s42 = sadd.s32 %s41, 1
      %s43 = scalar_select %p40, %s41, %s42
      %p46 = pneg %p40
      %p47 = scmp.eq.s32.totalorder %s17, 1
      %p48 = por %p46, %p47
      %p49 = scmp.ne.s32.totalorder %s41, %s44
      %p50 = scmp.eq.s32.totalorder %s17, 0
      %p51 = por %p49, %p50
      %p52 = scmp.ne.s32.totalorder %s41, %s44
      %p53 = scmp.eq.s32.totalorder %s22, 1
      %p54 = por %p52, %p53
      %p55 = scmp.ne.s32.totalorder %s44, %s45
      %p56 = scmp.eq.s32.totalorder %s22, 0
      %p57 = por %p55, %p56
      %p58 = scmp.ne.s32.totalorder %s44, %s45
      %p59 = scmp.eq.s32.totalorder %s23, 1
      %p60 = por %p58, %p59
      %p62 = scmp.ne.s32.totalorder %s45, %s61
      %p63 = scmp.eq.s32.totalorder %s23, 0
      %p64 = por %p62, %p63
      %s65 = sadd.s32 %s24, %s25
      %s66 = sadd.s32 %s36, %s32
      %s67 = ssub.s32 %s65, %s66
      %p68 = scmp.eq.s32.totalorder %s67, 0
      %s70 = sadd.s32 %s69, 1
      %s71 = scalar_select %p68, %s69, %s70
      %p74 = pneg %p68
      %p75 = scmp.eq.s32.totalorder %s17, 1
      %p76 = por %p74, %p75
      %p77 = scmp.ne.s32.totalorder %s69, %s72
      %p78 = scmp.eq.s32.totalorder %s17, 0
      %p79 = por %p77, %p78
      %p80 = scmp.ne.s32.totalorder %s69, %s72
      %p81 = scmp.eq.s32.totalorder %s22, 1
      %p82 = por %p80, %p81
      %p83 = scmp.ne.s32.totalorder %s72, %s73
      %p84 = scmp.eq.s32.totalorder %s22, 0
      %p85 = por %p83, %p84
      %p86 = scmp.ne.s32.totalorder %s72, %s73
      %p87 = scmp.eq.s32.totalorder %s23, 1
      %p88 = por %p86, %p87
      %p90 = scmp.ne.s32.totalorder %s73, %s89
      %p91 = scmp.eq.s32.totalorder %s23, 0
      %p92 = por %p90, %p91
      %s93 = ssub.s32 %s24, %s36
      %p94 = scmp.eq.s32.totalorder %s93, 0
      %s96 = sadd.s32 %s95, 1
      %s97 = scalar_select %p94, %s95, %s96
      %p100 = pneg %p94
      %p101 = scmp.eq.s32.totalorder %s17, 1
      %p102 = por %p100, %p101
      %p103 = scmp.ne.s32.totalorder %s95, %s98
      %p104 = scmp.eq.s32.totalorder %s17, 0
      %p105 = por %p103, %p104
      %p106 = scmp.ne.s32.totalorder %s95, %s98
      %p107 = scmp.eq.s32.totalorder %s22, 1
      %p108 = por %p106, %p107
      %p109 = scmp.ne.s32.totalorder %s98, %s99
      %p110 = scmp.eq.s32.totalorder %s22, 0
      %p111 = por %p109, %p110
      %p112 = scmp.ne.s32.totalorder %s98, %s99
      %p113 = scmp.eq.s32.totalorder %s23, 1
      %p114 = por %p112, %p113
      %p116 = scmp.ne.s32.totalorder %s99, %s115
      %p117 = scmp.eq.s32.totalorder %s23, 0
      %p118 = por %p116, %p117
      %p119 = scmp.le.s32.totalorder 1, %s17
      %p120 = scmp.lt.s32.totalorder %s17, 3
      %p121 = pnand %p119, %p120
      %p122 = pneg %p121
      // Predicated region
      $region9: #{tpu_custom_call.1} parent=5 // pred_check
        _
      $region10: #{tpu_custom_call.1} parent=5 // pred_check_branch
        %124 = sbr.rel (%p121) target = $region12
      $region11: #{tpu_custom_call.1} parent=5 // pred_region
        %s125 = ssub.s32 %s17, 1
      $region12: #{tpu_custom_call.1} parent=5 // pred_fallthru
        _
      %p126 = scmp.lt.s32.totalorder %s17, 2
      // Predicated region
      $region13: #{tpu_custom_call.1} parent=5 // pred_check
        %p127 = pneg %p126
      $region14: #{tpu_custom_call.1} parent=5 // pred_check_branch
        %129 = sbr.rel (%p127) target = $region16
      $region15: #{tpu_custom_call.1} parent=5 // pred_region
        // Predicated region
        $region17: #{tpu_custom_call.1} parent=15 // pred_check
          %p130 = pneg %p51
        $region18: #{tpu_custom_call.1} parent=15 // pred_check_branch
          %132 = sbr.rel (%p130) target = $region20
        $region19: #{tpu_custom_call.1} parent=15 // pred_region
          %s133 = sand.u32 %s41, 1
          %s134 = scalar_lea.sflag [#allocation3], %s133
          %s135 = sand.u32 %s41, 1
          %s136 = smul.addr %s135, 8
          %s137 = scalar_lea.vmem [#allocation2], %s136
          %s138 = sadd.s32 %s24, %s25
          %s140 = ssub.s32 128, 128
          %141 = vsyncadd %s134, %s140
          %s142 = smul.addr %s138, 128
          %s143 = scalar_lea.hbm %s0, %s142
          %s145 = sshll.u32 %s137, 4
          %s146 = int_to_ptr.vmem [resolvable:$true] %s145
          %148 = dma.hbm_to_vmem [thread:$0]  %s143, 128, %s146, %s134
        $region20: #{tpu_custom_call.1} parent=15 // pred_fallthru
          _
        // Predicated region
        $region21: #{tpu_custom_call.1} parent=15 // pred_check
          %p149 = pneg %p79
        $region22: #{tpu_custom_call.1} parent=15 // pred_check_branch
          %151 = sbr.rel (%p149) target = $region24
        $region23: #{tpu_custom_call.1} parent=15 // pred_region
          %s152 = sand.u32 %s69, 1
          %s153 = scalar_lea.sflag [#allocation6], %s152
          %s154 = sand.u32 %s69, 1
          %s155 = smul.addr %s154, 8
          %s156 = scalar_lea.vmem [#allocation5], %s155
          %s157 = sadd.s32 %s24, %s25
          %s159 = ssub.s32 128, 128
          %160 = vsyncadd %s153, %s159
          %s161 = smul.addr %s157, 128
          %s162 = scalar_lea.hbm %s1, %s161
          %s164 = sshll.u32 %s156, 4
          %s165 = int_to_ptr.vmem [resolvable:$true] %s164
          %167 = dma.hbm_to_vmem [thread:$0]  %s162, 128, %s165, %s153
        $region24: #{tpu_custom_call.1} parent=15 // pred_fallthru
          _
      $region16: #{tpu_custom_call.1} parent=5 // pred_fallthru
        _
      %p168 = scmp.le.s32.totalorder 1, %s17
      %p169 = scmp.lt.s32.totalorder %s17, 3
      %p170 = pnand %p168, %p169
      %p171 = pneg %p170
      // Predicated region
      $region25: #{tpu_custom_call.1} parent=5 // pred_check
        _
      $region26: #{tpu_custom_call.1} parent=5 // pred_check_branch
        %173 = sbr.rel (%p170) target = $region28
      $region27: #{tpu_custom_call.1} parent=5 // pred_region
        %s174 = ssub.s32 %s17, 1
        %s175 = sand.u32 %s44, 1
        %s176 = scalar_lea.sflag [#allocation3], %s175
        %s177 = sand.u32 %s44, 1
        %s178 = smul.addr %s177, 8
        %s179 = scalar_lea.vmem [#allocation2], %s178
        // Predicated region
        $region29: #{tpu_custom_call.1} parent=27 // pred_check
          %p180 = pneg %p57
        $region30: #{tpu_custom_call.1} parent=27 // pred_check_branch
          %182 = sbr.rel (%p180) target = $region32
        $region31: #{tpu_custom_call.1} parent=27 // pred_region
          %183 = dma.done %s176, 128
        $region32: #{tpu_custom_call.1} parent=27 // pred_fallthru
          _
        %s184 = sand.u32 %s72, 1
        %s185 = scalar_lea.sflag [#allocation6], %s184
        %s186 = sand.u32 %s72, 1
        %s187 = smul.addr %s186, 8
        %s188 = scalar_lea.vmem [#allocation5], %s187
        // Predicated region
        $region33: #{tpu_custom_call.1} parent=27 // pred_check
          %p189 = pneg %p85
        $region34: #{tpu_custom_call.1} parent=27 // pred_check_branch
          %191 = sbr.rel (%p189) target = $region36
        $region35: #{tpu_custom_call.1} parent=27 // pred_region
          %192 = dma.done %s185, 128
        $region36: #{tpu_custom_call.1} parent=27 // pred_fallthru
          _
        %s193 = sand.u32 %s44, 1
        %s194 = scalar_lea.sflag [#allocation3], %s193
        %s195 = sand.u32 %s44, 1
        %s196 = smul.addr %s195, 8
        %s197 = scalar_lea.vmem [#allocation2], %s196
        %p198 = pneg %p57
        %p199 = pneg %p54
        %s200 = sand.u32 %s72, 1
        %s201 = scalar_lea.sflag [#allocation6], %s200
        %s202 = sand.u32 %s72, 1
        %s203 = smul.addr %s202, 8
        %s204 = scalar_lea.vmem [#allocation5], %s203
        %p205 = pneg %p85
        %p206 = pneg %p82
        %p207 = pneg %p111
        %p208 = pneg %p108
        %s209 = sand.u32 %s98, 1
        %s210 = scalar_lea.sflag [#allocation4], %s209
        %s211 = sand.u32 %s98, 1
        %s212 = smul.addr %s211, 8
        %s213 = scalar_lea.vmem [#allocation7], %s212
        %s214 = sadd.s32 %s26, %s27
        %s215 = sadd.s32 %s26, %s27
        %p216 = scmp.eq.s32.totalorder %s27, 0
        // Predicated region
        $region37: #{tpu_custom_call.1} parent=27 // pred_check
          %p217 = pneg %p216
        $region38: #{tpu_custom_call.1} parent=27 // pred_check_branch
          %219 = sbr.rel (%p217) target = $region40
        $region39: #{tpu_custom_call.1} parent=27 // pred_region
          %220 = vst [vmem:[%s213] sm:$0xff] 0.0
        $region40: #{tpu_custom_call.1} parent=27 // pred_fallthru
          _
        %v221 = vld [vmem:[%s179] sm:$0xff]
        %v222 = vld [vmem:[%s188] sm:$0xff]
        %v223 = vmul.f32 %v222, %v221
        %v224 = vadd.f32 %v223, 1.0
        %v225 = vmul.f32 %v224, 0.5
        %v226 = vlog2.pop %v225
        %v227 = vmul.f32 %v226, 0.6931472
        %v228 = vmax.f32 %v227, -100.0
        %v229 = vsub.f32 0.0, %v228
        %v230 = vand.u32 2147483647, %v221
        %v231 = vsub.f32 %v230, 1.0
        %v232 = vld [vmem:[%s213] sm:$0xff]
        %v233 = vmul.f32 %v231, %v231
        %v234 = vmul.f32 %v233, 0.0001
        %v235 = vadd.f32 %v229, %v234
        %v236 = vadd.f32 %v232, %v235
        %237 = vst [vmem:[%s213] sm:$0xff] %v236
        %s238 = sand.u32 %s98, 1
        %s239 = scalar_lea.sflag [#allocation4], %s238
        %s240 = sand.u32 %s98, 1
        %s241 = smul.addr %s240, 8
        %s242 = scalar_lea.vmem [#allocation7], %s241
        // Predicated region
        $region41: #{tpu_custom_call.1} parent=27 // pred_check
          %p243 = pneg %p108
        $region42: #{tpu_custom_call.1} parent=27 // pred_check_branch
          %245 = sbr.rel (%p243) target = $region44
        $region43: #{tpu_custom_call.1} parent=27 // pred_region
          %s247 = ssub.s32 128, 128
          %248 = vsyncadd %s239, %s247
          %s249 = smul.addr %s26, 128
          %s250 = scalar_lea.hbm %s2, %s249
          %s252 = sshll.u32 %s242, 4
          %s253 = int_to_ptr.vmem [resolvable:$true] %s252
          %255 = dma.vmem_to_hbm [thread:$0]  %s253, 128, %s250, %s239
        $region44: #{tpu_custom_call.1} parent=27 // pred_fallthru
          _
      $region28: #{tpu_custom_call.1} parent=5 // pred_fallthru
        _
      %p256 = scmp.le.s32.totalorder 2, %s17
      // Predicated region
      $region45: #{tpu_custom_call.1} parent=5 // pred_check
        %p257 = pneg %p256
      $region46: #{tpu_custom_call.1} parent=5 // pred_check_branch
        %259 = sbr.rel (%p257) target = $region48
      $region47: #{tpu_custom_call.1} parent=5 // pred_region
        %s260 = ssub.s32 %s17, 2
        // Predicated region
        $region49: #{tpu_custom_call.1} parent=47 // pred_check
          %p261 = pneg %p114
        $region50: #{tpu_custom_call.1} parent=47 // pred_check_branch
          %263 = sbr.rel (%p261) target = $region52
        $region51: #{tpu_custom_call.1} parent=47 // pred_region
          %s264 = sand.u32 %s99, 1
          %s265 = scalar_lea.sflag [#allocation4], %s264
          %s266 = sand.u32 %s99, 1
          %s267 = smul.addr %s266, 8
          %s268 = scalar_lea.vmem [#allocation7], %s267
          %269 = dma.done %s265, 128
        $region52: #{tpu_custom_call.1} parent=47 // pred_fallthru
          _
      $region48: #{tpu_custom_call.1} parent=5 // pred_fallthru
        _
    $region6: #{tpu_custom_call.1} parent=1 // loop_footer
      %s21 = sadd.s32 1, %s17
    $region7: #{tpu_custom_call.1} parent=1 // loop_footer_branch
      %16 = sbr.rel target = $region3
    $region8: #{tpu_custom_call.1} parent=1 // loop_exit
      _
    %270 = vsyncpa [#allocation3], 1
    %s271 = scalar_lea.sflag [#allocation3], 1
    %272 = vsyncpa %s271, 1
    %273 = vsyncpa [#allocation6], 1
    %s274 = scalar_lea.sflag [#allocation6], 1
    %275 = vsyncpa %s274, 1
    %276 = vsyncpa [#allocation4], 1
    %s277 = scalar_lea.sflag [#allocation4], 1
    %278 = vsyncpa %s277, 1

</llo_original>
